<compile_context>
chip_gen: v6e
topology: v6e:2x2x1
jax: 0.10.0
libtpu: 0.0.40
codegen_flags: <defaults>
</compile_context>

<pallas_src>
import functools

import jax
import jax.numpy as jnp
from jax.experimental import pallas as pl
from jax.experimental.pallas import tpu as pltpu

_LANES = 128
_MIN_TILE_ROWS = 512   # ~256 KiB f32 per block: keeps per-grid-step overhead amortized
_TARGET_BLOCKS = 4     # >= 2 grid steps per TensorCore on v7x (2 TCs share the grid axis)


def _round_up(x, m):
    return ((x + m - 1) // m) * m


def _sublane_multiple(dtype):
    # Sub-32-bit dtypes pack along sublanes: f32 -> 8, bf16/f16 -> 16, int8/fp8 -> 32.
    return max(8, 32 // jnp.dtype(dtype).itemsize)


def _has_native_bf16_math():
    # v6e / v7x have bf16 VPU + EUP; v5e and older do not. Default to the safe f32 path.
    try:
        kind = jax.devices()[0].device_kind.lower()
    except Exception:
        return False
    return any(tag in kind for tag in ("v6", "v7", "trillium"))


def _swish_kernel(x_ref, o_ref, *, compute_dtype):
    x = x_ref[...].astype(compute_dtype)
    if jnp.dtype(compute_dtype) == jnp.dtype(jnp.float32):
        # sigmoid(x) = 1 / (1 + exp(-x)); exp and the approximate reciprocal both
        # issue on the EUP slot, leaving the VALU nearly idle for this mem-bound op.
        sig = pl.reciprocal(jnp.exp(-x) + 1.0, approx=True)
    else:
        # Native bf16 math (v6e/v7x): tanh form keeps the transcendental on the EUP
        # without an f32 upcast (halves vreg pressure and VALU element work).
        half = jnp.asarray(0.5, dtype=compute_dtype)
        one = jnp.asarray(1.0, dtype=compute_dtype)
        sig = half * (jnp.tanh(half * x) + one)
    o_ref[...] = (x * sig).astype(o_ref.dtype)


def swish(x, *, max_tile_rows=4096):
    """Elementwise swish / SiLU: y = x * sigmoid(x). Matches torch semantics & dtype."""
    orig_shape = x.shape
    dtype = x.dtype
    n = x.size
    if n == 0:
        return x

    x_flat = jnp.ravel(x)
    main = (n // _LANES) * _LANES   # lane-aligned prefix handled by the kernel
    rem = n - main                  # < 128 trailing elements handled by plain jnp

    if main == 0:
        # Tiny input: not worth a kernel launch.
        return (x_flat * jax.nn.sigmoid(x_flat)).reshape(orig_shape)

    rows = main // _LANES
    sub = _sublane_multiple(dtype)

    # ---- block sizing -----------------------------------------------------
    if rows <= sub:
        tile_rows = rows            # full extent (exempt from divisibility rule)
        num_blocks = 1
    else:
        # >= _TARGET_BLOCKS balanced blocks when big enough, each >= _MIN_TILE_ROWS,
        # and never exceeding max_tile_rows (VMEM guardrail documented above).
        num_blocks = min(_TARGET_BLOCKS, max(1, rows // _MIN_TILE_ROWS))
        num_blocks = max(num_blocks, pl.cdiv(rows, max_tile_rows))
        if num_blocks == 1:
            tile_rows = rows        # single full-extent block
        else:
            tile_rows = _round_up(pl.cdiv(rows, num_blocks), sub)
            num_blocks = pl.cdiv(rows, tile_rows)

    x_main = (x_flat[:main] if rem else x_flat).reshape(rows, _LANES)

    compute_dtype = (
        jnp.bfloat16
        if (dtype == jnp.bfloat16 and _has_native_bf16_math())
        else jnp.float32
    )
    kernel = functools.partial(_swish_kernel, compute_dtype=compute_dtype)

    out_main = pl.pallas_call(
        kernel,
        out_shape=jax.ShapeDtypeStruct((rows, _LANES), dtype),
        grid_spec=pltpu.PrefetchScalarGridSpec(
            num_scalar_prefetch=0,
            grid=(num_blocks,),
            in_specs=[pl.BlockSpec((tile_rows, _LANES), lambda i: (i, 0))],
            out_specs=pl.BlockSpec((tile_rows, _LANES), lambda i: (i, 0)),
        ),
        compiler_params=pltpu.CompilerParams(
            dimension_semantics=("parallel",),
        ),
    )(x_main)

    out_flat = out_main.reshape(-1)
    if rem:
        tail = x_flat[main:]
        out_flat = jnp.concatenate([out_flat, tail * jax.nn.sigmoid(tail)])
    return out_flat.reshape(orig_shape)


if __name__ == "__main__":
    key = jax.random.PRNGKey(0)

    # The approximate EUP reciprocal used for sigmoid's denominator carries a small
    # relative error, so compare with a correspondingly relaxed tolerance.
    TOL = dict(atol=2e-2, rtol=2e-2)

    # Primary check: NCHW conv-net activation, small shape.
    x = jax.random.normal(key, (2, 4, 16, 16), dtype=jnp.float32)
    y = jax.block_until_ready(swish(x))
    assert y.shape == x.shape and y.dtype == x.dtype
    assert jnp.allclose(y, x * jax.nn.sigmoid(x), **TOL)

    # Ragged size: lane-aligned prefix through the kernel + plain-jnp tail.
    x2 = jax.random.normal(jax.random.PRNGKey(1), (2, 3, 37, 19), dtype=jnp.float32)
    y2 = jax.block_until_ready(swish(x2))
    assert y2.shape == x2.shape
    assert jnp.allclose(y2, x2 * jax.nn.sigmoid(x2), **TOL)

    # Multi-block balanced "parallel" grid path.
    x3 = jax.random.normal(jax.random.PRNGKey(2), (2, 16, 64, 100), dtype=jnp.float32)
    y3 = jax.block_until_ready(swish(x3))
    assert jnp.allclose(y3, x3 * jax.nn.sigmoid(x3), **TOL)

    # bf16 path (native bf16 math on v6e/v7x, f32 upcast on v5e and older).
    x4 = jax.random.normal(jax.random.PRNGKey(3), (4, 8, 32, 32), dtype=jnp.bfloat16)
    y4 = jax.block_until_ready(swish(x4))
    ref4 = (x4.astype(jnp.float32) * jax.nn.sigmoid(x4.astype(jnp.float32)))
    assert y4.dtype == jnp.bfloat16
    assert jnp.allclose(y4.astype(jnp.float32), ref4, atol=5e-2, rtol=5e-2)

    print("KERNEL_OK")
</pallas_src>

<mosaic_0001>
module attributes {stable_mosaic.version = 11 : i64} {
  func.func @_swish_kernel(%arg0: i32, %arg1: memref<16x128xf32, #tpu.memory_space<vmem>>, %arg2: memref<16x128xf32, #tpu.memory_space<vmem>>) attributes {dimension_semantics = [#tpu.dimension_semantics<parallel>], iteration_bounds = array<i64: 1>, scalar_prefetch = 0 : i64, scratch_operands = 0 : i64, tpu.core_type = #tpu.core_type<tc>, window_params = [{transform_indices = @transform_0, window_bounds = array<i64: 16, 128>}, {transform_indices = @transform_1, window_bounds = array<i64: 16, 128>}]} {
    %c0 = arith.constant 0 : index
    %c0_0 = arith.constant 0 : index
    %0 = vector.load %arg1[%c0, %c0_0] : memref<16x128xf32, #tpu.memory_space<vmem>>, vector<16x128xf32>
    %cst = arith.constant 0.000000e+00 : f32
    %1 = vector.broadcast %cst : f32 to vector<16x128xf32>
    %2 = arith.subf %1, %0 : vector<16x128xf32>
    %3 = math.exp %2 : vector<16x128xf32>
    %cst_1 = arith.constant 1.000000e+00 : f32
    %4 = vector.broadcast %cst_1 : f32 to vector<16x128xf32>
    %5 = arith.addf %3, %4 : vector<16x128xf32>
    %6 = tpu.reciprocal %5 {approx = true} : vector<16x128xf32> -> vector<16x128xf32>
    %7 = arith.mulf %0, %6 : vector<16x128xf32>
    %c0_2 = arith.constant 0 : index
    %c0_3 = arith.constant 0 : index
    %8 = vector.load %arg2[%c0_2, %c0_3] : memref<16x128xf32, #tpu.memory_space<vmem>>, vector<16x128xf32>
    tpu.vector_store %arg2[%c0_2, %c0_3], %7 {strides = array<i32>} : memref<16x128xf32, #tpu.memory_space<vmem>>, vector<16x128xf32>,
    return
  }
  func.func @transform_0(%arg0: i32) -> (i32, i32) {
    %c0_i32 = arith.constant 0 : i32
    %c0_i32_0 = arith.constant 0 : i32
    return %arg0, %c0_i32 : i32, i32
  }
  func.func @transform_1(%arg0: i32) -> (i32, i32) {
    %c0_i32 = arith.constant 0 : i32
    %c0_i32_0 = arith.constant 0 : i32
    return %arg0, %c0_i32 : i32, i32
  }
}

</mosaic_0001>

<llo_original>
// kernel: tpu_custom_call.1
$region0: #{tpu_custom_call.1}
  #allocation0 [shape = 'u32[]', space=smem, size = 0x4, offset = 0x4, fixed_abs, tag = 'smem constant byte address 0x4 - core index']
  #allocation1 [shape = 'u32[144,128]{1,0:T(1,128)}', space=vmem, size = 0x12000, scoped, tag = 'internal scratch']
  %s0 = inlined_call_operand.hbm [shape: f32[16,128], index: 0, kind: input, shape index: {}]
  %s1 = inlined_call_operand.hbm [shape: f32[16,128], index: 1, kind: output, shape index: {}]
  %s2 = sld [smem:[#allocation0]]
  $region18: #{tpu_custom_call.1} parent=0
    _
  %s4 = ssub.s32 1, %s2
  %s5 = scalar_select 0, %s4, %s2
  $region1: #{tpu_custom_call.1} parent=0
    #allocation2 [shape = 'u8[8192]{0}', space=vmem, size = 0x2000, scoped, tag = 'input window, operand 0, single buffered']
    #allocation3 [shape = 's32[1]{0}', space=sflag, size = 0x4, scoped, tag = 'scoped memory for tpu_custom_call.1']
    #allocation4 [shape = 's32[1]{0}', space=sflag, size = 0x4, scoped, tag = 'scoped memory for tpu_custom_call.1']
    #allocation5 [shape = 'u8[8192]{0}', space=vmem, size = 0x2000, scoped, tag = 'output window, operand 0, single buffered']
    %6 = vsyncpa [#allocation3], 0
    %7 = vsyncpa [#allocation4], 0
    // Predicated region
    $region2: #{tpu_custom_call.1} parent=1 // pred_check
      _
    $region3: #{tpu_custom_call.1} parent=1 // pred_check_branch
      %9 = sbr.rel (0) target = $region5
    $region4: #{tpu_custom_call.1} parent=1 // pred_region
      %s11 = ssub.s32 256, 256
      %12 = vsyncadd [#allocation3], %s11
      %s13 = sshll.u32 [#allocation2], 4
      %s14 = int_to_ptr.vmem [resolvable:$true] %s13
      %19 = dma.hbm_to_vmem [thread:$0]  %s0, 256, %s14, [#allocation3], 128, 128, 8
    $region5: #{tpu_custom_call.1} parent=1 // pred_fallthru
      _
    // Predicated region
    $region6: #{tpu_custom_call.1} parent=1 // pred_check
      _
    $region7: #{tpu_custom_call.1} parent=1 // pred_check_branch
      %21 = sbr.rel (0) target = $region9
    $region8: #{tpu_custom_call.1} parent=1 // pred_region
      %22 = dma.done [#allocation3], 256
    $region9: #{tpu_custom_call.1} parent=1 // pred_fallthru
      _
    %v23 = vld [vmem:[#allocation2] sm:$0xff]
    %v24 = vld [vmem:[#allocation2 + $0x8] sm:$0xff]
    %v25 = vsub.f32 0.0, %v23
    %v26 = vsub.f32 0.0, %v24
    %v27 = vmul.f32 %v25, 1.442695
    %v28 = vpow.pop %v27
    %v29 = vmul.f32 %v26, 1.442695
    %v30 = vpow.pop %v29
    %v31 = vadd.f32 %v28, 1.0
    %v32 = vadd.f32 %v30, 1.0
    %v33 = vrcp.pop %v31
    %v34 = vrcp.pop %v32
    %v35 = vmul.f32 %v23, %v33
    %v36 = vmul.f32 %v24, %v34
    %37 = vst [vmem:[#allocation5] sm:$0xff] %v35
    %38 = vst [vmem:[#allocation5 + $0x8] sm:$0xff] %v36
    // Predicated region
    $region10: #{tpu_custom_call.1} parent=1 // pred_check
      _
    $region11: #{tpu_custom_call.1} parent=1 // pred_check_branch
      %40 = sbr.rel (0) target = $region13
    $region12: #{tpu_custom_call.1} parent=1 // pred_region
      %s42 = ssub.s32 256, 256
      %43 = vsyncadd [#allocation4], %s42
      %s44 = sshll.u32 [#allocation5], 4
      %s45 = int_to_ptr.vmem [resolvable:$true] %s44
      %50 = dma.vmem_to_hbm [thread:$0]  %s45, 256, %s1, [#allocation4], 128, 128, 8
    $region13: #{tpu_custom_call.1} parent=1 // pred_fallthru
      _
    // Predicated region
    $region14: #{tpu_custom_call.1} parent=1 // pred_check
      _
    $region15: #{tpu_custom_call.1} parent=1 // pred_check_branch
      %52 = sbr.rel (0) target = $region17
    $region16: #{tpu_custom_call.1} parent=1 // pred_region
      %53 = dma.done [#allocation4], 256
    $region17: #{tpu_custom_call.1} parent=1 // pred_fallthru
      _
    %54 = vsyncpa [#allocation3], 1
    %55 = vsyncpa [#allocation4], 1

</llo_original>
